<compile_context>
chip_gen: v7x
topology: tpu7x:2x2x1
jax: 0.10.0
libtpu: 0.0.40
codegen_flags: <defaults>
</compile_context>

<pallas_src>
import functools

import jax
import jax.numpy as jnp
from jax import lax
from jax.experimental import pallas as pl
from jax.experimental.pallas import tpu as pltpu

LANE = 128
SUBLANE = 8
SUPER = SUBLANE * LANE          # 1024 elements per (8, 128) slab
BLOCK_SUPERS = 256              # 256 slabs = 256K elems = 1 MiB f32 / stream / step


def _bce_partial_kernel(x_ref, y_ref, out_ref, *, n_slabs, block_supers, needs_mask):
    """Per-block partial BCE sum.  x_ref/y_ref: (block_supers, 8, 128)."""
    x = x_ref[...].astype(jnp.float32)
    y = y_ref[...].astype(jnp.float32)

    if needs_mask:
        # Only the last grid step can read past the end of the slab stream.
        # Mask at slab granularity BEFORE the logs (masking after would not
        # recover from NaN produced by log of garbage); (x=1, y=1) yields an
        # exactly-zero loss contribution.
        shape = (block_supers, SUBLANE, LANE)
        slab = pl.program_id(0) * block_supers + lax.broadcasted_iota(
            jnp.int32, shape, 0
        )
        valid = slab < n_slabs
        x = jnp.where(valid, x, 1.0)
        y = jnp.where(valid, y, 1.0)

    # torch.binary_cross_entropy clamps each log term at -100.
    log_x = jnp.maximum(jnp.log(x), -100.0)
    log_1mx = jnp.maximum(jnp.log(1.0 - x), -100.0)
    loss = -(y * log_x + (1.0 - y) * log_1mx)

    # Reduce only over the leading (untiled) axis -> plain vreg adds on the
    # VPU; keep a lane-dense (8,128) vector partial per block.  The single
    # cross-lane reduction happens once, in the wrapper.
    out_ref[...] = jnp.sum(loss, axis=0, keepdims=True)


def bce_loss(inp, label, reduction="mean", block_supers=BLOCK_SUPERS):
    """Pallas implementation of F.binary_cross_entropy(inp, label, reduction)."""
    assert inp.shape == label.shape
    n_elems = inp.size

    # Flatten in native dtype (free, contiguous bitcast).
    x = inp.reshape(-1)
    y = label.reshape(-1)

    # Pad only the ragged tail (at most 1023 elements) so the (G, 8, 128)
    # reshape stays a free bitcast in the common case.  Padding with
    # (x=1, y=1) contributes exactly zero loss, so no element mask is needed.
    rem = n_elems % SUPER
    if rem:
        pad = SUPER - rem
        x = jnp.pad(x, (0, pad), constant_values=1.0)
        y = jnp.pad(y, (0, pad), constant_values=1.0)
    g = x.shape[0] // SUPER
    x3 = x.reshape(g, SUBLANE, LANE)
    y3 = y.reshape(g, SUBLANE, LANE)

    bs = max(1, min(block_supers, g))
    num_blocks = pl.cdiv(g, bs)
    needs_mask = (num_blocks * bs) != g   # static: compiled out when even

    in_spec = pl.BlockSpec((bs, SUBLANE, LANE), lambda i: (i, 0, 0))
    out_spec = pl.BlockSpec((1, SUBLANE, LANE), lambda i: (i, 0, 0))

    kernel = functools.partial(
        _bce_partial_kernel,
        n_slabs=g,
        block_supers=bs,
        needs_mask=needs_mask,
    )

    partials = pl.pallas_call(
        kernel,
        out_shape=jax.ShapeDtypeStruct((num_blocks, SUBLANE, LANE), jnp.float32),
        grid_spec=pltpu.PrefetchScalarGridSpec(
            num_scalar_prefetch=0,
            grid=(num_blocks,),
            in_specs=[in_spec, in_spec],
            out_specs=out_spec,
        ),
        compiler_params=pltpu.CompilerParams(
            dimension_semantics=("parallel",),   # independent partials -> megacore OK
            vmem_limit_bytes=32 * 1024 * 1024,
        ),
    )(x3, y3)

    total = jnp.sum(partials)  # tiny final cross-lane reduction in XLA

    if reduction == "mean":
        return total / jnp.float32(n_elems)
    elif reduction == "sum":
        return total
    else:
        # TODO(synk): elementwise-output variant for reduction='none' if needed.
        raise NotImplementedError("reduction='none' not supported by this kernel")


def _bce_ref(inp, label):
    inp = inp.astype(jnp.float32)
    label = label.astype(jnp.float32)
    return jnp.mean(
        -(
            label * jnp.maximum(jnp.log(inp), -100.0)
            + (1.0 - label) * jnp.maximum(jnp.log(1.0 - inp), -100.0)
        )
    )


if __name__ == "__main__":
    key = jax.random.PRNGKey(0)
    k1, k2, k3, k4 = jax.random.split(key, 4)

    # Test 1: NCHW probability map, numel % 1024 == 0, single grid block.
    B, C, H, W = 2, 4, 16, 16
    inp = jax.nn.sigmoid(jax.random.normal(k1, (B, C, H, W), jnp.float32))
    label = (jax.random.uniform(k2, (B, C, H, W)) > 0.5).astype(jnp.float32)

    loss = jax.block_until_ready(bce_loss(inp, label, reduction="mean"))
    ref = _bce_ref(inp, label)
    assert jnp.allclose(loss, ref, atol=1e-5, rtol=1e-5), (loss, ref)

    # Test 2: ragged size (not a multiple of 1024) + multiple grid steps with
    # an uneven last block (block_supers=1 forces the masked path off; use 2
    # to exercise the per-slab mask) to cover padding / partial-sum paths.
    shape2 = (2, 3, 33, 17)  # 3366 elements -> 4 slabs after padding
    inp2 = jax.nn.sigmoid(jax.random.normal(k3, shape2, jnp.float32))
    label2 = (jax.random.uniform(k4, shape2) > 0.5).astype(jnp.float32)

    loss2a = jax.block_until_ready(
        bce_loss(inp2, label2, reduction="mean", block_supers=1)
    )
    loss2b = jax.block_until_ready(
        bce_loss(inp2, label2, reduction="mean", block_supers=3)  # uneven -> mask
    )
    ref2 = _bce_ref(inp2, label2)
    assert jnp.allclose(loss2a, ref2, atol=1e-5, rtol=1e-5), (loss2a, ref2)
    assert jnp.allclose(loss2b, ref2, atol=1e-5, rtol=1e-5), (loss2b, ref2)

    print("KERNEL_OK")
</pallas_src>

<mosaic_0001>
module attributes {stable_mosaic.version = 11 : i64} {
  func.func @_bce_partial_kernel(%arg0: i32, %arg1: memref<2x8x128xf32, #tpu.memory_space<vmem>>, %arg2: memref<2x8x128xf32, #tpu.memory_space<vmem>>, %arg3: memref<1x8x128xf32, #tpu.memory_space<vmem>>) attributes {dimension_semantics = [#tpu.dimension_semantics<parallel>], iteration_bounds = array<i64: 1>, scalar_prefetch = 0 : i64, scratch_operands = 0 : i64, tpu.core_type = #tpu.core_type<tc>, window_params = [{transform_indices = @transform_0, window_bounds = array<i64: 2, 8, 128>}, {transform_indices = @transform_1, window_bounds = array<i64: 2, 8, 128>}, {transform_indices = @transform_2, window_bounds = array<i64: 1, 8, 128>}]} {
    %c0 = arith.constant 0 : index
    %c0_0 = arith.constant 0 : index
    %c0_1 = arith.constant 0 : index
    %0 = vector.load %arg1[%c0, %c0_0, %c0_1] : memref<2x8x128xf32, #tpu.memory_space<vmem>>, vector<2x8x128xf32>
    %c0_2 = arith.constant 0 : index
    %c0_3 = arith.constant 0 : index
    %c0_4 = arith.constant 0 : index
    %1 = vector.load %arg2[%c0_2, %c0_3, %c0_4] : memref<2x8x128xf32, #tpu.memory_space<vmem>>, vector<2x8x128xf32>
    %2 = math.log %0 : vector<2x8x128xf32>
    %cst = arith.constant -1.000000e+02 : f32
    %3 = vector.broadcast %cst : f32 to vector<2x8x128xf32>
    %4 = arith.maximumf %2, %3 : vector<2x8x128xf32>
    %cst_5 = arith.constant 1.000000e+00 : f32
    %5 = vector.broadcast %cst_5 : f32 to vector<2x8x128xf32>
    %6 = arith.subf %5, %0 : vector<2x8x128xf32>
    %7 = math.log %6 : vector<2x8x128xf32>
    %cst_6 = arith.constant -1.000000e+02 : f32
    %8 = vector.broadcast %cst_6 : f32 to vector<2x8x128xf32>
    %9 = arith.maximumf %7, %8 : vector<2x8x128xf32>
    %10 = arith.mulf %1, %4 : vector<2x8x128xf32>
    %cst_7 = arith.constant 1.000000e+00 : f32
    %11 = vector.broadcast %cst_7 : f32 to vector<2x8x128xf32>
    %12 = arith.subf %11, %1 : vector<2x8x128xf32>
    %13 = arith.mulf %12, %9 : vector<2x8x128xf32>
    %14 = arith.addf %10, %13 : vector<2x8x128xf32>
    %cst_8 = arith.constant 0.000000e+00 : f32
    %15 = vector.broadcast %cst_8 : f32 to vector<2x8x128xf32>
    %16 = arith.subf %15, %14 : vector<2x8x128xf32>
    %cst_9 = arith.constant dense<0.000000e+00> : vector<8x128xf32>
    %17 = vector.multi_reduction <add>, %16, %cst_9 [0] : vector<2x8x128xf32> to vector<8x128xf32>
    %18 = vector.shape_cast %17 : vector<8x128xf32> to vector<1x8x128xf32>
    %c0_10 = arith.constant 0 : index
    %c0_11 = arith.constant 0 : index
    %c0_12 = arith.constant 0 : index
    %19 = vector.load %arg3[%c0_10, %c0_11, %c0_12] : memref<1x8x128xf32, #tpu.memory_space<vmem>>, vector<1x8x128xf32>
    tpu.vector_store %arg3[%c0_10, %c0_11, %c0_12], %18 {strides = array<i32>} : memref<1x8x128xf32, #tpu.memory_space<vmem>>, vector<1x8x128xf32>,
    return
  }
  func.func @transform_0(%arg0: i32) -> (i32, i32, i32) {
    %c0_i32 = arith.constant 0 : i32
    %c0_i32_0 = arith.constant 0 : i32
    %c0_i32_1 = arith.constant 0 : i32
    return %arg0, %c0_i32, %c0_i32_0 : i32, i32, i32
  }
  func.func @transform_1(%arg0: i32) -> (i32, i32, i32) {
    %c0_i32 = arith.constant 0 : i32
    %c0_i32_0 = arith.constant 0 : i32
    %c0_i32_1 = arith.constant 0 : i32
    return %arg0, %c0_i32, %c0_i32_0 : i32, i32, i32
  }
  func.func @transform_2(%arg0: i32) -> (i32, i32, i32) {
    %c0_i32 = arith.constant 0 : i32
    %c0_i32_0 = arith.constant 0 : i32
    %c0_i32_1 = arith.constant 0 : i32
    return %arg0, %c0_i32, %c0_i32_0 : i32, i32, i32
  }
}

</mosaic_0001>

<llo_original>
// kernel: tpu_custom_call.1
$region0: #{tpu_custom_call.1}
  #allocation0 [shape = 'u32[]', space=smem, size = 0x4, offset = 0x4, fixed_abs, tag = 'smem constant byte address 0x4 - core index']
  #allocation1 [shape = 'u32[144,128]{1,0:T(1,128)}', space=vmem, size = 0x12000, scoped, tag = 'internal scratch']
  %s0 = inlined_call_operand.hbm [shape: f32[2,8,128], index: 0, kind: input, shape index: {}]
  %s1 = inlined_call_operand.hbm [shape: f32[2,8,128], index: 1, kind: input, shape index: {}]
  %s2 = inlined_call_operand.hbm [shape: f32[1,8,128], index: 2, kind: output, shape index: {}]
  %s3 = sld [smem:[#allocation0]]
  $region26: #{tpu_custom_call.1} parent=0
    _
  %s5 = ssub.s32 1, %s3
  %s6 = scalar_select 0, %s5, %s3
  $region1: #{tpu_custom_call.1} parent=0
    #allocation2 [shape = 'u8[8192]{0}', space=vmem, size = 0x2000, scoped, tag = 'input window, operand 0, single buffered']
    #allocation3 [shape = 's32[1]{0}', space=sflag, size = 0x4, scoped, tag = 'scoped memory for tpu_custom_call.1']
    #allocation4 [shape = 's32[1]{0}', space=sflag, size = 0x4, scoped, tag = 'scoped memory for tpu_custom_call.1']
    #allocation5 [shape = 'u8[8192]{0}', space=vmem, size = 0x2000, scoped, tag = 'input window, operand 1, single buffered']
    #allocation6 [shape = 's32[1]{0}', space=sflag, size = 0x4, scoped, tag = 'scoped memory for tpu_custom_call.1']
    #allocation7 [shape = 'u8[4096]{0}', space=vmem, size = 0x1000, scoped, tag = 'output window, operand 0, single buffered']
    %7 = vsyncpa [#allocation3], 0
    %8 = vsyncpa [#allocation6], 0
    %9 = vsyncpa [#allocation4], 0
    // Predicated region
    $region2: #{tpu_custom_call.1} parent=1 // pred_check
      _
    $region3: #{tpu_custom_call.1} parent=1 // pred_check_branch
      %11 = sbr.rel (0) target = $region5
    $region4: #{tpu_custom_call.1} parent=1 // pred_region
      %s13 = ssub.s32 256, 256
      %14 = vsyncadd [#allocation3], %s13
      %s15 = sshll.u32 [#allocation2], 4
      %s16 = int_to_ptr.vmem [resolvable:$true] %s15
      %21 = dma.hbm_to_vmem [thread:$0]  %s0, 256, %s16, [#allocation3], 128, 128, 8
    $region5: #{tpu_custom_call.1} parent=1 // pred_fallthru
      _
    // Predicated region
    $region6: #{tpu_custom_call.1} parent=1 // pred_check
      _
    $region7: #{tpu_custom_call.1} parent=1 // pred_check_branch
      %23 = sbr.rel (0) target = $region9
    $region8: #{tpu_custom_call.1} parent=1 // pred_region
      %s25 = ssub.s32 256, 256
      %26 = vsyncadd [#allocation6], %s25
      %s27 = sshll.u32 [#allocation5], 4
      %s28 = int_to_ptr.vmem [resolvable:$true] %s27
      %33 = dma.hbm_to_vmem [thread:$0]  %s1, 256, %s28, [#allocation6], 128, 128, 8
    $region9: #{tpu_custom_call.1} parent=1 // pred_fallthru
      _
    // Predicated region
    $region10: #{tpu_custom_call.1} parent=1 // pred_check
      _
    $region11: #{tpu_custom_call.1} parent=1 // pred_check_branch
      %35 = sbr.rel (0) target = $region13
    $region12: #{tpu_custom_call.1} parent=1 // pred_region
      %36 = dma.done [#allocation3], 256
    $region13: #{tpu_custom_call.1} parent=1 // pred_fallthru
      _
    // Predicated region
    $region14: #{tpu_custom_call.1} parent=1 // pred_check
      _
    $region15: #{tpu_custom_call.1} parent=1 // pred_check_branch
      %38 = sbr.rel (0) target = $region17
    $region16: #{tpu_custom_call.1} parent=1 // pred_region
      %39 = dma.done [#allocation6], 256
    $region17: #{tpu_custom_call.1} parent=1 // pred_fallthru
      _
    %v40 = vld [vmem:[#allocation2] sm:$0xff]
    %v41 = vld [vmem:[#allocation2 + $0x8] sm:$0xff]
    %v42 = vld [vmem:[#allocation5] sm:$0xff]
    %v43 = vld [vmem:[#allocation5 + $0x8] sm:$0xff]
    %v44 = vlog2.pop %v40
    %v45 = vmul.f32 %v44, 0.6931472
    %v46 = vlog2.pop %v41
    %v47 = vmul.f32 %v46, 0.6931472
    %v48 = vmax.f32 %v45, -100.0
    %v49 = vmax.f32 %v47, -100.0
    %v50 = vsub.f32 1.0, %v40
    %v51 = vsub.f32 1.0, %v41
    %v52 = vlog2.pop %v50
    %v53 = vmul.f32 %v52, 0.6931472
    %v54 = vlog2.pop %v51
    %v55 = vmul.f32 %v54, 0.6931472
    %v56 = vmax.f32 %v53, -100.0
    %v57 = vmax.f32 %v55, -100.0
    %v58 = vmul.f32 %v42, %v48
    %v59 = vmul.f32 %v43, %v49
    %v60 = vsub.f32 1.0, %v42
    %v61 = vsub.f32 1.0, %v43
    %v62 = vmul.f32 %v60, %v56
    %v63 = vmul.f32 %v61, %v57
    %v64 = vadd.f32 %v58, %v62
    %v65 = vadd.f32 %v59, %v63
    %v66 = vsub.f32 0.0, %v64
    %v67 = vsub.f32 0.0, %v65
    %v68 = vadd.f32 %v66, %v67
    %69 = vst [vmem:[#allocation7] sm:$0xff] %v68
    // Predicated region
    $region18: #{tpu_custom_call.1} parent=1 // pred_check
      _
    $region19: #{tpu_custom_call.1} parent=1 // pred_check_branch
      %71 = sbr.rel (0) target = $region21
    $region20: #{tpu_custom_call.1} parent=1 // pred_region
      %s73 = ssub.s32 128, 128
      %74 = vsyncadd [#allocation4], %s73
      %s76 = sshll.u32 [#allocation7], 4
      %s77 = int_to_ptr.vmem [resolvable:$true] %s76
      %79 = dma.vmem_to_hbm [thread:$0]  %s77, 128, %s2, [#allocation4]
    $region21: #{tpu_custom_call.1} parent=1 // pred_fallthru
      _
    // Predicated region
    $region22: #{tpu_custom_call.1} parent=1 // pred_check
      _
    $region23: #{tpu_custom_call.1} parent=1 // pred_check_branch
      %81 = sbr.rel (0) target = $region25
    $region24: #{tpu_custom_call.1} parent=1 // pred_region
      %82 = dma.done [#allocation4], 128
    $region25: #{tpu_custom_call.1} parent=1 // pred_fallthru
      _
    %83 = vsyncpa [#allocation3], 1
    %84 = vsyncpa [#allocation6], 1
    %85 = vsyncpa [#allocation4], 1

</llo_original>
